<compile_context>
chip_gen: v7x
topology: tpu7x:2x2x1
jax: 0.10.0
libtpu: 0.0.40
codegen_flags: <defaults>
</compile_context>

<pallas_src>
import functools

import jax
import jax.numpy as jnp
from jax.experimental import pallas as pl
from jax.experimental.pallas import tpu as pltpu


def _round_up(v, m):
    return ((v + m - 1) // m) * m


def _pick_rows_per_step(nph, npw, in_channels, patch_size, x_itemsize):
    """Patch rows handled per grid step (must divide nph).

    Target M = rps * npw ~= 256 (fills the 256-row MXU on v6e/v7x, two passes
    on v5e's 128-wide MXU), bounded by the VMEM footprint of the input stripe
    (lane-padded to 128) and by unroll length.
    """
    best = 1
    for rps in range(1, nph + 1):
        if nph % rps:
            continue
        m = rps * npw
        stripe_bytes = (in_channels * rps * patch_size *
                        _round_up(npw, 8) * 128 * x_itemsize)
        if m <= 256 and rps <= 64 and stripe_bytes <= (8 << 20):
            best = rps
    return best


def _patch_embed_kernel(x_ref, w_ref, addf_ref, o_ref, pat_ref, *,
                        C, PS, NPW, RPS, P, P_pad, ROW_TILES):
    # x_ref:    (1, C, RPS*PS, NPW, PS) stripe of RPS patch rows (input dtype)
    # w_ref:    (P_pad, E)              projection weight (transposed, padded, bf16)
    # addf_ref: (N+1, E)  f32           row 0: cls+pos[0]; rows 1..N: pos[1:]+bias
    # o_ref:    (1, N+1, E)             full output slab for this batch element
    # pat_ref:  (M, P_pad) bf16         scratch: assembled patch matrix
    t = pl.program_id(1)
    M = RPS * NPW

    # Token 0 = CLS token + its positional embedding, once per batch element.
    @pl.when(t == 0)
    def _write_cls():
        o_ref[0, 0:1, :] = addf_ref[0:1, :].astype(o_ref.dtype)

    # Fused patchification with WIDE stores: for each patch row rr, gather the
    # (NPW, PS) pieces in torch's (channel, row, col) order, lane-concatenate
    # them (plus the K zero-pad) in registers, cast to bf16 once, and issue a
    # single fully-aligned (NPW, P_pad) store.
    pad_cols = P_pad - P
    zpad = (jnp.zeros((NPW, pad_cols), dtype=x_ref.dtype)
            if pad_cols else None)
    for rr in range(RPS):
        pieces = []
        for c in range(C):
            for i in range(PS):
                pieces.append(x_ref[0, c, rr * PS + i])          # (NPW, PS)
        if zpad is not None:
            pieces.append(zpad)
        row_slab = jnp.concatenate(pieces, axis=-1)               # (NPW, P_pad)
        pat_ref[rr * NPW:(rr + 1) * NPW, :] = row_slab.astype(pat_ref.dtype)

    # Project on the MXU (bf16 operands, f32 accumulation), add pos+bias, store.
    y = jnp.dot(pat_ref[...], w_ref[...], preferred_element_type=jnp.float32)

    if ROW_TILES == 1:
        # Static path (typical: one grid step per batch element).
        y = y + addf_ref[1:1 + M, :]
        o_ref[0, 1:1 + M, :] = y.astype(o_ref.dtype)
    else:
        tok0 = 1 + t * M
        y = y + addf_ref[pl.ds(tok0, M), :]
        o_ref[0, pl.ds(tok0, M), :] = y.astype(o_ref.dtype)


def _forward_fused(x, w_bf16, addf, *, nph, npw, patch_size):
    B, C, H, _ = x.shape
    N = nph * npw
    P_pad, E = w_bf16.shape
    P = C * patch_size * patch_size

    RPS = _pick_rows_per_step(nph, npw, C, patch_size, x.dtype.itemsize)
    M = RPS * npw
    row_tiles = nph // RPS

    # Free bitcast reshape: split W -> (npw, patch) so a rectangular BlockSpec
    # delivers a stripe of patch rows already split by patch column.
    xr = x.reshape(B, C, H, npw, patch_size)

    # Explicit VMEM budget from padded block footprints (v7x has 64 MiB/TC).
    in_blk = (C * RPS * patch_size * _round_up(npw, 8) *
              _round_up(patch_size, 128) * x.dtype.itemsize)
    w_blk = P_pad * _round_up(E, 128) * 2
    addf_blk = _round_up(N + 1, 8) * _round_up(E, 128) * 4
    out_blk = _round_up(N + 1, 16) * _round_up(E, 128) * x.dtype.itemsize
    scratch_blk = _round_up(M, 16) * P_pad * 2
    vmem_needed = 2 * (in_blk + w_blk + addf_blk + out_blk) + scratch_blk
    vmem_limit = int(min(64 << 20, max(16 << 20, vmem_needed + (4 << 20))))

    kernel = functools.partial(_patch_embed_kernel, C=C, PS=patch_size,
                               NPW=npw, RPS=RPS, P=P, P_pad=P_pad,
                               ROW_TILES=row_tiles)
    return pl.pallas_call(
        kernel,
        out_shape=jax.ShapeDtypeStruct((B, N + 1, E), x.dtype),
        grid_spec=pltpu.PrefetchScalarGridSpec(
            num_scalar_prefetch=0,
            grid=(B, row_tiles),
            in_specs=[
                # Stripe of RPS patch rows of the image.
                pl.BlockSpec((1, C, RPS * patch_size, npw, patch_size),
                             lambda b, t: (b, 0, t, 0, 0)),
                # Projection weight: resident across the whole grid.
                pl.BlockSpec((P_pad, E), lambda b, t: (0, 0)),
                # cls/pos/bias table: resident across the whole grid.
                pl.BlockSpec((N + 1, E), lambda b, t: (0, 0)),
            ],
            # Full (N+1, E) output slab per batch element; revisited across the
            # row-tile axis, written back to HBM once per batch element.
            out_specs=pl.BlockSpec((1, N + 1, E), lambda b, t: (b, 0, 0)),
            scratch_shapes=[pltpu.VMEM((M, P_pad), jnp.bfloat16)],
        ),
        compiler_params=pltpu.CompilerParams(
            dimension_semantics=("parallel", "arbitrary"),
            vmem_limit_bytes=vmem_limit),
    )(xr, w_bf16, addf)


def patch_embedding_forward(x, weight, bias, cls_token, pos_embed, *,
                            img_size, patch_size):
    """Forward pass of the DINOv2-style PatchEmbedding module.

    x:         (B, C, H, W)  NCHW image batch (f32 or bf16)
    weight:    (E, P)        nn.Linear weight, P = C * patch_size**2
    bias:      (E,)
    cls_token: (1, 1, E)
    pos_embed: (1, N+1, E)   N = (img_size // patch_size)**2
    returns    (B, N+1, E)   same dtype as x

    Note: the projection runs in bf16 on the MXU with f32 accumulation; at
    real DINOv2 sizes (P=588) the per-token error is bf16-level, acceptable
    for inference but not bit-exact vs. an f32 reference.
    """
    B, C, H, W = x.shape
    if H != img_size or W != img_size:
        raise ValueError(f"Input image size ({H}x{W}) must match expected "
                         f"size ({img_size}x{img_size})")
    if img_size % patch_size != 0:
        raise ValueError("img_size must be divisible by patch_size")

    nph = img_size // patch_size
    npw = nph
    N = nph * npw
    P = C * patch_size * patch_size
    E = weight.shape[0]
    if weight.shape != (E, P):
        raise ValueError(f"weight shape {weight.shape} != ({E}, {P})")

    # One-time, parameter-sized prep: transposed + K-padded bf16 weight; bias
    # folded into the positional table; CLS + pos[0] precomputed as token 0.
    P_pad = _round_up(P, 128)
    w_t = jnp.transpose(weight).astype(jnp.float32)               # (P, E)
    w_bf16 = jnp.pad(w_t, ((0, P_pad - P), (0, 0))).astype(jnp.bfloat16)
    cls_row = (cls_token[0, 0, :] + pos_embed[0, 0, :])[None, :]  # (1, E)
    patch_rows = pos_embed[0, 1:, :] + bias[None, :]              # (N, E)
    addf = jnp.concatenate([cls_row, patch_rows], axis=0).astype(jnp.float32)

    return _forward_fused(x, w_bf16, addf, nph=nph, npw=npw,
                          patch_size=patch_size)


if __name__ == "__main__":
    # Small shapes consistent with the module (defaults are 224/14/3/768);
    # embed_dim kept lane-dense (multiple of 128).
    img_size, patch_size, in_channels, embed_dim = 16, 4, 4, 128
    B = 2
    nph = img_size // patch_size
    N = nph * nph                                # 16 patches
    P = in_channels * patch_size * patch_size    # 64

    key = jax.random.PRNGKey(0)
    kx, kw, kb, kc, kp = jax.random.split(key, 5)
    x = jax.random.normal(kx, (B, in_channels, img_size, img_size), jnp.float32)
    weight = jax.random.normal(kw, (embed_dim, P), jnp.float32) * 0.02
    bias = jax.random.normal(kb, (embed_dim,), jnp.float32) * 0.02
    cls_token = jax.random.normal(kc, (1, 1, embed_dim), jnp.float32)
    pos_embed = jax.random.normal(kp, (1, N + 1, embed_dim), jnp.float32)

    out = patch_embedding_forward(x, weight, bias, cls_token, pos_embed,
                                  img_size=img_size, patch_size=patch_size)
    out = jax.block_until_ready(out)

    # Pure-JAX float32 reference (torch unfold+permute+linear+cat+pos).
    xp = x.reshape(B, in_channels, nph, patch_size, nph, patch_size)
    xp = jnp.transpose(xp, (0, 2, 4, 1, 3, 5)).reshape(B, N, P)
    ref_patches = xp @ weight.T + bias
    ref = jnp.concatenate(
        [jnp.broadcast_to(cls_token, (B, 1, embed_dim)), ref_patches], axis=1)
    ref = ref + pos_embed

    assert out.shape == (B, N + 1, embed_dim)
    # bf16 operands on the MXU (f32 accumulation) vs. an f32 reference.
    err = float(jnp.max(jnp.abs(out - ref)))
    assert jnp.allclose(out, ref, atol=2e-2, rtol=2e-2), err
    print("KERNEL_OK")
</pallas_src>

<mosaic_0001>
module attributes {stable_mosaic.version = 11 : i64} {
  func.func @_patch_embed_kernel(%arg0: i32, %arg1: i32, %arg2: memref<1x4x16x4x4xf32, #tpu.memory_space<vmem>>, %arg3: memref<128x128xbf16, #tpu.memory_space<vmem>>, %arg4: memref<17x128xf32, #tpu.memory_space<vmem>>, %arg5: memref<1x17x128xf32, #tpu.memory_space<vmem>>, %arg6: memref<16x128xbf16, #tpu.memory_space<vmem>>) attributes {dimension_semantics = [#tpu.dimension_semantics<parallel>, #tpu.dimension_semantics<arbitrary>], iteration_bounds = array<i64: 2, 1>, scalar_prefetch = 0 : i64, scratch_operands = 1 : i64, tpu.core_type = #tpu.core_type<tc>, window_params = [{transform_indices = @transform_0, window_bounds = array<i64: 1, 4, 16, 4, 4>}, {pipeline_mode = #tpu.pipeline_mode<synchronous>, transform_indices = @transform_1, window_bounds = array<i64: 128, 128>}, {pipeline_mode = #tpu.pipeline_mode<synchronous>, transform_indices = @transform_2, window_bounds = array<i64: 17, 128>}, {transform_indices = @transform_3, window_bounds = array<i64: 1, 17, 128>}]} {
    %c0_i32 = arith.constant 0 : i32
    %0 = arith.cmpi eq, %arg1, %c0_i32 : i32
    %1 = arith.extui %0 : i1 to i32
    %c0_i32_0 = arith.constant 0 : i32
    %2 = arith.cmpi ne, %1, %c0_i32_0 : i32
    scf.if %2 {
      %c0_323 = arith.constant 0 : index
      %c0_324 = arith.constant 0 : index
      %156 = vector.load %arg4[%c0_323, %c0_324] : memref<17x128xf32, #tpu.memory_space<vmem>>, vector<1x128xf32>
      %c0_325 = arith.constant 0 : index
      %c0_326 = arith.constant 0 : index
      %c0_327 = arith.constant 0 : index
      %157 = vector.load %arg5[%c0_325, %c0_326, %c0_327] : memref<1x17x128xf32, #tpu.memory_space<vmem>>, vector<1x1x128xf32>
      %158 = vector.shape_cast %157 : vector<1x1x128xf32> to vector<1x128xf32>
      %159 = vector.shape_cast %156 : vector<1x128xf32> to vector<1x1x128xf32>
      tpu.vector_store %arg5[%c0_325, %c0_326, %c0_327], %159 {strides = array<i32>} : memref<1x17x128xf32, #tpu.memory_space<vmem>>, vector<1x1x128xf32>,
    } else {
    }
    %cst = arith.constant 0.000000e+00 : f32
    %3 = vector.broadcast %cst : f32 to vector<4x64xf32>
    %c0 = arith.constant 0 : index
    %c0_1 = arith.constant 0 : index
    %c0_2 = arith.constant 0 : index
    %c0_3 = arith.constant 0 : index
    %c0_4 = arith.constant 0 : index
    %4 = vector.load %arg2[%c0, %c0_1, %c0_2, %c0_3, %c0_4] : memref<1x4x16x4x4xf32, #tpu.memory_space<vmem>>, vector<1x1x1x4x4xf32>
    %5 = vector.shape_cast %4 : vector<1x1x1x4x4xf32> to vector<4x4xf32>
    %c0_5 = arith.constant 0 : index
    %c0_6 = arith.constant 0 : index
    %c1 = arith.constant 1 : index
    %c0_7 = arith.constant 0 : index
    %c0_8 = arith.constant 0 : index
    %6 = vector.load %arg2[%c0_5, %c0_6, %c1, %c0_7, %c0_8] : memref<1x4x16x4x4xf32, #tpu.memory_space<vmem>>, vector<1x1x1x4x4xf32>
    %7 = vector.shape_cast %6 : vector<1x1x1x4x4xf32> to vector<4x4xf32>
    %c0_9 = arith.constant 0 : index
    %c0_10 = arith.constant 0 : index
    %c2 = arith.constant 2 : index
    %c0_11 = arith.constant 0 : index
    %c0_12 = arith.constant 0 : index
    %8 = vector.load %arg2[%c0_9, %c0_10, %c2, %c0_11, %c0_12] : memref<1x4x16x4x4xf32, #tpu.memory_space<vmem>>, vector<1x1x1x4x4xf32>
    %9 = vector.shape_cast %8 : vector<1x1x1x4x4xf32> to vector<4x4xf32>
    %c0_13 = arith.constant 0 : index
    %c0_14 = arith.constant 0 : index
    %c3 = arith.constant 3 : index
    %c0_15 = arith.constant 0 : index
    %c0_16 = arith.constant 0 : index
    %10 = vector.load %arg2[%c0_13, %c0_14, %c3, %c0_15, %c0_16] : memref<1x4x16x4x4xf32, #tpu.memory_space<vmem>>, vector<1x1x1x4x4xf32>
    %11 = vector.shape_cast %10 : vector<1x1x1x4x4xf32> to vector<4x4xf32>
    %c0_17 = arith.constant 0 : index
    %c1_18 = arith.constant 1 : index
    %c0_19 = arith.constant 0 : index
    %c0_20 = arith.constant 0 : index
    %c0_21 = arith.constant 0 : index
    %12 = vector.load %arg2[%c0_17, %c1_18, %c0_19, %c0_20, %c0_21] : memref<1x4x16x4x4xf32, #tpu.memory_space<vmem>>, vector<1x1x1x4x4xf32>
    %13 = vector.shape_cast %12 : vector<1x1x1x4x4xf32> to vector<4x4xf32>
    %c0_22 = arith.constant 0 : index
    %c1_23 = arith.constant 1 : index
    %c1_24 = arith.constant 1 : index
    %c0_25 = arith.constant 0 : index
    %c0_26 = arith.constant 0 : index
    %14 = vector.load %arg2[%c0_22, %c1_23, %c1_24, %c0_25, %c0_26] : memref<1x4x16x4x4xf32, #tpu.memory_space<vmem>>, vector<1x1x1x4x4xf32>
    %15 = vector.shape_cast %14 : vector<1x1x1x4x4xf32> to vector<4x4xf32>
    %c0_27 = arith.constant 0 : index
    %c1_28 = arith.constant 1 : index
    %c2_29 = arith.constant 2 : index
    %c0_30 = arith.constant 0 : index
    %c0_31 = arith.constant 0 : index
    %16 = vector.load %arg2[%c0_27, %c1_28, %c2_29, %c0_30, %c0_31] : memref<1x4x16x4x4xf32, #tpu.memory_space<vmem>>, vector<1x1x1x4x4xf32>
    %17 = vector.shape_cast %16 : vector<1x1x1x4x4xf32> to vector<4x4xf32>
    %c0_32 = arith.constant 0 : index
    %c1_33 = arith.constant 1 : index
    %c3_34 = arith.constant 3 : index
    %c0_35 = arith.constant 0 : index
    %c0_36 = arith.constant 0 : index
    %18 = vector.load %arg2[%c0_32, %c1_33, %c3_34, %c0_35, %c0_36] : memref<1x4x16x4x4xf32, #tpu.memory_space<vmem>>, vector<1x1x1x4x4xf32>
    %19 = vector.shape_cast %18 : vector<1x1x1x4x4xf32> to vector<4x4xf32>
    %c0_37 = arith.constant 0 : index
    %c2_38 = arith.constant 2 : index
    %c0_39 = arith.constant 0 : index
    %c0_40 = arith.constant 0 : index
    %c0_41 = arith.constant 0 : index
    %20 = vector.load %arg2[%c0_37, %c2_38, %c0_39, %c0_40, %c0_41] : memref<1x4x16x4x4xf32, #tpu.memory_space<vmem>>, vector<1x1x1x4x4xf32>
    %21 = vector.shape_cast %20 : vector<1x1x1x4x4xf32> to vector<4x4xf32>
    %c0_42 = arith.constant 0 : index
    %c2_43 = arith.constant 2 : index
    %c1_44 = arith.constant 1 : index
    %c0_45 = arith.constant 0 : index
    %c0_46 = arith.constant 0 : index
    %22 = vector.load %arg2[%c0_42, %c2_43, %c1_44, %c0_45, %c0_46] : memref<1x4x16x4x4xf32, #tpu.memory_space<vmem>>, vector<1x1x1x4x4xf32>
    %23 = vector.shape_cast %22 : vector<1x1x1x4x4xf32> to vector<4x4xf32>
    %c0_47 = arith.constant 0 : index
    %c2_48 = arith.constant 2 : index
    %c2_49 = arith.constant 2 : index
    %c0_50 = arith.constant 0 : index
    %c0_51 = arith.constant 0 : index
    %24 = vector.load %arg2[%c0_47, %c2_48, %c2_49, %c0_50, %c0_51] : memref<1x4x16x4x4xf32, #tpu.memory_space<vmem>>, vector<1x1x1x4x4xf32>
    %25 = vector.shape_cast %24 : vector<1x1x1x4x4xf32> to vector<4x4xf32>
    %c0_52 = arith.constant 0 : index
    %c2_53 = arith.constant 2 : index
    %c3_54 = arith.constant 3 : index
    %c0_55 = arith.constant 0 : index
    %c0_56 = arith.constant 0 : index
    %26 = vector.load %arg2[%c0_52, %c2_53, %c3_54, %c0_55, %c0_56] : memref<1x4x16x4x4xf32, #tpu.memory_space<vmem>>, vector<1x1x1x4x4xf32>
    %27 = vector.shape_cast %26 : vector<1x1x1x4x4xf32> to vector<4x4xf32>
    %c0_57 = arith.constant 0 : index
    %c3_58 = arith.constant 3 : index
    %c0_59 = arith.constant 0 : index
    %c0_60 = arith.constant 0 : index
    %c0_61 = arith.constant 0 : index
    %28 = vector.load %arg2[%c0_57, %c3_58, %c0_59, %c0_60, %c0_61] : memref<1x4x16x4x4xf32, #tpu.memory_space<vmem>>, vector<1x1x1x4x4xf32>
    %29 = vector.shape_cast %28 : vector<1x1x1x4x4xf32> to vector<4x4xf32>
    %c0_62 = arith.constant 0 : index
    %c3_63 = arith.constant 3 : index
    %c1_64 = arith.constant 1 : index
    %c0_65 = arith.constant 0 : index
    %c0_66 = arith.constant 0 : index
    %30 = vector.load %arg2[%c0_62, %c3_63, %c1_64, %c0_65, %c0_66] : memref<1x4x16x4x4xf32, #tpu.memory_space<vmem>>, vector<1x1x1x4x4xf32>
    %31 = vector.shape_cast %30 : vector<1x1x1x4x4xf32> to vector<4x4xf32>
    %c0_67 = arith.constant 0 : index
    %c3_68 = arith.constant 3 : index
    %c2_69 = arith.constant 2 : index
    %c0_70 = arith.constant 0 : index
    %c0_71 = arith.constant 0 : index
    %32 = vector.load %arg2[%c0_67, %c3_68, %c2_69, %c0_70, %c0_71] : memref<1x4x16x4x4xf32, #tpu.memory_space<vmem>>, vector<1x1x1x4x4xf32>
    %33 = vector.shape_cast %32 : vector<1x1x1x4x4xf32> to vector<4x4xf32>
    %c0_72 = arith.constant 0 : index
    %c3_73 = arith.constant 3 : index
    %c3_74 = arith.constant 3 : index
    %c0_75 = arith.constant 0 : index
    %c0_76 = arith.constant 0 : index
    %34 = vector.load %arg2[%c0_72, %c3_73, %c3_74, %c0_75, %c0_76] : memref<1x4x16x4x4xf32, #tpu.memory_space<vmem>>, vector<1x1x1x4x4xf32>
    %35 = vector.shape_cast %34 : vector<1x1x1x4x4xf32> to vector<4x4xf32>
    %36 = tpu.concatenate %5, %7, %9, %11, %13, %15, %17, %19, %21, %23, %25, %27, %29, %31, %33, %35 in 1 : vector<4x4xf32>, vector<4x4xf32>, vector<4x4xf32>, vector<4x4xf32>, vector<4x4xf32>, vector<4x4xf32>, vector<4x4xf32>, vector<4x4xf32>, vector<4x4xf32>, vector<4x4xf32>, vector<4x4xf32>, vector<4x4xf32>, vector<4x4xf32>, vector<4x4xf32>, vector<4x4xf32>, vector<4x4xf32> -> vector<4x64xf32>
    %37 = tpu.concatenate %36, %3 in 1 : vector<4x64xf32>, vector<4x64xf32> -> vector<4x128xf32>
    %38 = arith.truncf %37 : vector<4x128xf32> to vector<4x128xbf16>
    %c0_77 = arith.constant 0 : index
    %c0_78 = arith.constant 0 : index
    %39 = vector.load %arg6[%c0_77, %c0_78] : memref<16x128xbf16, #tpu.memory_space<vmem>>, vector<4x128xbf16>
    tpu.vector_store %arg6[%c0_77, %c0_78], %38 {strides = array<i32>} : memref<16x128xbf16, #tpu.memory_space<vmem>>, vector<4x128xbf16>,
    %c0_79 = arith.constant 0 : index
    %c0_80 = arith.constant 0 : index
    %c4 = arith.constant 4 : index
    %c0_81 = arith.constant 0 : index
    %c0_82 = arith.constant 0 : index
    %40 = vector.load %arg2[%c0_79, %c0_80, %c4, %c0_81, %c0_82] : memref<1x4x16x4x4xf32, #tpu.memory_space<vmem>>, vector<1x1x1x4x4xf32>
    %41 = vector.shape_cast %40 : vector<1x1x1x4x4xf32> to vector<4x4xf32>
    %c0_83 = arith.constant 0 : index
    %c0_84 = arith.constant 0 : index
    %c5 = arith.constant 5 : index
    %c0_85 = arith.constant 0 : index
    %c0_86 = arith.constant 0 : index
    %42 = vector.load %arg2[%c0_83, %c0_84, %c5, %c0_85, %c0_86] : memref<1x4x16x4x4xf32, #tpu.memory_space<vmem>>, vector<1x1x1x4x4xf32>
    %43 = vector.shape_cast %42 : vector<1x1x1x4x4xf32> to vector<4x4xf32>
    %c0_87 = arith.constant 0 : index
    %c0_88 = arith.constant 0 : index
    %c6 = arith.constant 6 : index
    %c0_89 = arith.constant 0 : index
    %c0_90 = arith.constant 0 : index
    %44 = vector.load %arg2[%c0_87, %c0_88, %c6, %c0_89, %c0_90] : memref<1x4x16x4x4xf32, #tpu.memory_space<vmem>>, vector<1x1x1x4x4xf32>
    %45 = vector.shape_cast %44 : vector<1x1x1x4x4xf32> to vector<4x4xf32>
    %c0_91 = arith.constant 0 : index
    %c0_92 = arith.constant 0 : index
    %c7 = arith.constant 7 : index
    %c0_93 = arith.constant 0 : index
    %c0_94 = arith.constant 0 : index
    %46 = vector.load %arg2[%c0_91, %c0_92, %c7, %c0_93, %c0_94] : memref<1x4x16x4x4xf32, #tpu.memory_space<vmem>>, vector<1x1x1x4x4xf32>
    %47 = vector.shape_cast %46 : vector<1x1x1x4x4xf32> to vector<4x4xf32>
    %c0_95 = arith.constant 0 : index
    %c1_96 = arith.constant 1 : index
    %c4_97 = arith.constant 4 : index
    %c0_98 = arith.constant 0 : index
    %c0_99 = arith.constant 0 : index
    %48 = vector.load %arg2[%c0_95, %c1_96, %c4_97, %c0_98, %c0_99] : memref<1x4x16x4x4xf32, #tpu.memory_space<vmem>>, vector<1x1x1x4x4xf32>
    %49 = vector.shape_cast %48 : vector<1x1x1x4x4xf32> to vector<4x4xf32>
    %c0_100 = arith.constant 0 : index
    %c1_101 = arith.constant 1 : index
    %c5_102 = arith.constant 5 : index
    %c0_103 = arith.constant 0 : index
    %c0_104 = arith.constant 0 : index
    %50 = vector.load %arg2[%c0_100, %c1_101, %c5_102, %c0_103, %c0_104] : memref<1x4x16x4x4xf32, #tpu.memory_space<vmem>>, vector<1x1x1x4x4xf32>
    %51 = vector.shape_cast %50 : vector<1x1x1x4x4xf32> to vector<4x4xf32>
    %c0_105 = arith.constant 0 : index
    %c1_106 = arith.constant 1 : index
    %c6_107 = arith.constant 6 : index
    %c0_108 = arith.constant 0 : index
    %c0_109 = arith.constant 0 : index
    %52 = vector.load %arg2[%c0_105, %c1_106, %c6_107, %c0_108, %c0_109] : memref<1x4x16x4x4xf32, #tpu.memory_space<vmem>>, vector<1x1x1x4x4xf32>
    %53 = vector.shape_cast %52 : vector<1x1x1x4x4xf32> to vector<4x4xf32>
    %c0_110 = arith.constant 0 : index
    %c1_111 = arith.constant 1 : index
    %c7_112 = arith.constant 7 : index
    %c0_113 = arith.constant 0 : index
    %c0_114 = arith.constant 0 : index
    %54 = vector.load %arg2[%c0_110, %c1_111, %c7_112, %c0_113, %c0_114] : memref<1x4x16x4x4xf32, #tpu.memory_space<vmem>>, vector<1x1x1x4x4xf32>
    %55 = vector.shape_cast %54 : vector<1x1x1x4x4xf32> to vector<4x4xf32>
    %c0_115 = arith.constant 0 : index
    %c2_116 = arith.constant 2 : index
    %c4_117 = arith.constant 4 : index
    %c0_118 = arith.constant 0 : index
    %c0_119 = arith.constant 0 : index
    %56 = vector.load %arg2[%c0_115, %c2_116, %c4_117, %c0_118, %c0_119] : memref<1x4x16x4x4xf32, #tpu.memory_space<vmem>>, vector<1x1x1x4x4xf32>
    %57 = vector.shape_cast %56 : vector<1x1x1x4x4xf32> to vector<4x4xf32>
    %c0_120 = arith.constant 0 : index
    %c2_121 = arith.constant 2 : index
    %c5_122 = arith.constant 5 : index
    %c0_123 = arith.constant 0 : index
    %c0_124 = arith.constant 0 : index
    %58 = vector.load %arg2[%c0_120, %c2_121, %c5_122, %c0_123, %c0_124] : memref<1x4x16x4x4xf32, #tpu.memory_space<vmem>>, vector<1x1x1x4x4xf32>
    %59 = vector.shape_cast %58 : vector<1x1x1x4x4xf32> to vector<4x4xf32>
    %c0_125 = arith.constant 0 : index
    %c2_126 = arith.constant 2 : index
    %c6_127 = arith.constant 6 : index
    %c0_128 = arith.constant 0 : index
    %c0_129 = arith.constant 0 : index
    %60 = vector.load %arg2[%c0_125, %c2_126, %c6_127, %c0_128, %c0_129] : memref<1x4x16x4x4xf32, #tpu.memory_space<vmem>>, vector<1x1x1x4x4xf32>
    %61 = vector.shape_cast %60 : vector<1x1x1x4x4xf32> to vector<4x4xf32>
    %c0_130 = arith.constant 0 : index
    %c2_131 = arith.constant 2 : index
    %c7_132 = arith.constant 7 : index
    %c0_133 = arith.constant 0 : index
    %c0_134 = arith.constant 0 : index
    %62 = vector.load %arg2[%c0_130, %c2_131, %c7_132, %c0_133, %c0_134] : memref<1x4x16x4x4xf32, #tpu.memory_space<vmem>>, vector<1x1x1x4x4xf32>
    %63 = vector.shape_cast %62 : vector<1x1x1x4x4xf32> to vector<4x4xf32>
    %c0_135 = arith.constant 0 : index
    %c3_136 = arith.constant 3 : index
    %c4_137 = arith.constant 4 : index
    %c0_138 = arith.constant 0 : index
    %c0_139 = arith.constant 0 : index
    %64 = vector.load %arg2[%c0_135, %c3_136, %c4_137, %c0_138, %c0_139] : memref<1x4x16x4x4xf32, #tpu.memory_space<vmem>>, vector<1x1x1x4x4xf32>
    %65 = vector.shape_cast %64 : vector<1x1x1x4x4xf32> to vector<4x4xf32>
    %c0_140 = arith.constant 0 : index
    %c3_141 = arith.constant 3 : index
    %c5_142 = arith.constant 5 : index
    %c0_143 = arith.constant 0 : index
    %c0_144 = arith.constant 0 : index
    %66 = vector.load %arg2[%c0_140, %c3_141, %c5_142, %c0_143, %c0_144] : memref<1x4x16x4x4xf32, #tpu.memory_space<vmem>>, vector<1x1x1x4x4xf32>
    %67 = vector.shape_cast %66 : vector<1x1x1x4x4xf32> to vector<4x4xf32>
    %c0_145 = arith.constant 0 : index
    %c3_146 = arith.constant 3 : index
    %c6_147 = arith.constant 6 : index
    %c0_148 = arith.constant 0 : index
    %c0_149 = arith.constant 0 : index
    %68 = vector.load %arg2[%c0_145, %c3_146, %c6_147, %c0_148, %c0_149] : memref<1x4x16x4x4xf32, #tpu.memory_space<vmem>>, vector<1x1x1x4x4xf32>
    %69 = vector.shape_cast %68 : vector<1x1x1x4x4xf32> to vector<4x4xf32>
    %c0_150 = arith.constant 0 : index
    %c3_151 = arith.constant 3 : index
    %c7_152 = arith.constant 7 : index
    %c0_153 = arith.constant 0 : index
    %c0_154 = arith.constant 0 : index
    %70 = vector.load %arg2[%c0_150, %c3_151, %c7_152, %c0_153, %c0_154] : memref<1x4x16x4x4xf32, #tpu.memory_space<vmem>>, vector<1x1x1x4x4xf32>
    %71 = vector.shape_cast %70 : vector<1x1x1x4x4xf32> to vector<4x4xf32>
    %72 = tpu.concatenate %41, %43, %45, %47, %49, %51, %53, %55, %57, %59, %61, %63, %65, %67, %69, %71 in 1 : vector<4x4xf32>, vector<4x4xf32>, vector<4x4xf32>, vector<4x4xf32>, vector<4x4xf32>, vector<4x4xf32>, vector<4x4xf32>, vector<4x4xf32>, vector<4x4xf32>, vector<4x4xf32>, vector<4x4xf32>, vector<4x4xf32>, vector<4x4xf32>, vector<4x4xf32>, vector<4x4xf32>, vector<4x4xf32> -> vector<4x64xf32>
    %73 = tpu.concatenate %72, %3 in 1 : vector<4x64xf32>, vector<4x64xf32> -> vector<4x128xf32>
    %74 = arith.truncf %73 : vector<4x128xf32> to vector<4x128xbf16>
    %c4_155 = arith.constant 4 : index
    %c0_156 = arith.constant 0 : index
    %75 = vector.load %arg6[%c4_155, %c0_156] : memref<16x128xbf16, #tpu.memory_space<vmem>>, vector<4x128xbf16>
    tpu.vector_store %arg6[%c4_155, %c0_156], %74 {strides = array<i32>} : memref<16x128xbf16, #tpu.memory_space<vmem>>, vector<4x128xbf16>,
    %c0_157 = arith.constant 0 : index
    %c0_158 = arith.constant 0 : index
    %c8 = arith.constant 8 : index
    %c0_159 = arith.constant 0 : index
    %c0_160 = arith.constant 0 : index
    %76 = vector.load %arg2[%c0_157, %c0_158, %c8, %c0_159, %c0_160] : memref<1x4x16x4x4xf32, #tpu.memory_space<vmem>>, vector<1x1x1x4x4xf32>
    %77 = vector.shape_cast %76 : vector<1x1x1x4x4xf32> to vector<4x4xf32>
    %c0_161 = arith.constant 0 : index
    %c0_162 = arith.constant 0 : index
    %c9 = arith.constant 9 : index
    %c0_163 = arith.constant 0 : index
    %c0_164 = arith.constant 0 : index
    %78 = vector.load %arg2[%c0_161, %c0_162, %c9, %c0_163, %c0_164] : memref<1x4x16x4x4xf32, #tpu.memory_space<vmem>>, vector<1x1x1x4x4xf32>
    %79 = vector.shape_cast %78 : vector<1x1x1x4x4xf32> to vector<4x4xf32>
    %c0_165 = arith.constant 0 : index
    %c0_166 = arith.constant 0 : index
    %c10 = arith.constant 10 : index
    %c0_167 = arith.constant 0 : index
    %c0_168 = arith.constant 0 : index
    %80 = vector.load %arg2[%c0_165, %c0_166, %c10, %c0_167, %c0_168] : memref<1x4x16x4x4xf32, #tpu.memory_space<vmem>>, vector<1x1x1x4x4xf32>
    %81 = vector.shape_cast %80 : vector<1x1x1x4x4xf32> to vector<4x4xf32>
    %c0_169 = arith.constant 0 : index
    %c0_170 = arith.constant 0 : index
    %c11 = arith.constant 11 : index
    %c0_171 = arith.constant 0 : index
    %c0_172 = arith.constant 0 : index
    %82 = vector.load %arg2[%c0_169, %c0_170, %c11, %c0_171, %c0_172] : memref<1x4x16x4x4xf32, #tpu.memory_space<vmem>>, vector<1x1x1x4x4xf32>
    %83 = vector.shape_cast %82 : vector<1x1x1x4x4xf32> to vector<4x4xf32>
    %c0_173 = arith.constant 0 : index
    %c1_174 = arith.constant 1 : index
    %c8_175 = arith.constant 8 : index
    %c0_176 = arith.constant 0 : index
    %c0_177 = arith.constant 0 : index
    %84 = vector.load %arg2[%c0_173, %c1_174, %c8_175, %c0_176, %c0_177] : memref<1x4x16x4x4xf32, #tpu.memory_space<vmem>>, vector<1x1x1x4x4xf32>
    %85 = vector.shape_cast %84 : vector<1x1x1x4x4xf32> to vector<4x4xf32>
    %c0_178 = arith.constant 0 : index
    %c1_179 = arith.constant 1 : index
    %c9_180 = arith.constant 9 : index
    %c0_181 = arith.constant 0 : index
    %c0_182 = arith.constant 0 : index
    %86 = vector.load %arg2[%c0_178, %c1_179, %c9_180, %c0_181, %c0_182] : memref<1x4x16x4x4xf32, #tpu.memory_space<vmem>>, vector<1x1x1x4x4xf32>
    %87 = vector.shape_cast %86 : vector<1x1x1x4x4xf32> to vector<4x4xf32>
    %c0_183 = arith.constant 0 : index
    %c1_184 = arith.constant 1 : index
    %c10_185 = arith.constant 10 : index
    %c0_186 = arith.constant 0 : index
    %c0_187 = arith.constant 0 : index
    %88 = vector.load %arg2[%c0_183, %c1_184, %c10_185, %c0_186, %c0_187] : memref<1x4x16x4x4xf32, #tpu.memory_space<vmem>>, vector<1x1x1x4x4xf32>
    %89 = vector.shape_cast %88 : vector<1x1x1x4x4xf32> to vector<4x4xf32>
    %c0_188 = arith.constant 0 : index
    %c1_189 = arith.constant 1 : index
    %c11_190 = arith.constant 11 : index
    %c0_191 = arith.constant 0 : index
    %c0_192 = arith.constant 0 : index
    %90 = vector.load %arg2[%c0_188, %c1_189, %c11_190, %c0_191, %c0_192] : memref<1x4x16x4x4xf32, #tpu.memory_space<vmem>>, vector<1x1x1x4x4xf32>
    %91 = vector.shape_cast %90 : vector<1x1x1x4x4xf32> to vector<4x4xf32>
    %c0_193 = arith.constant 0 : index
    %c2_194 = arith.constant 2 : index
    %c8_195 = arith.constant 8 : index
    %c0_196 = arith.constant 0 : index
    %c0_197 = arith.constant 0 : index
    %92 = vector.load %arg2[%c0_193, %c2_194, %c8_195, %c0_196, %c0_197] : memref<1x4x16x4x4xf32, #tpu.memory_space<vmem>>, vector<1x1x1x4x4xf32>
    %93 = vector.shape_cast %92 : vector<1x1x1x4x4xf32> to vector<4x4xf32>
    %c0_198 = arith.constant 0 : index
    %c2_199 = arith.constant 2 : index
    %c9_200 = arith.constant 9 : index
    %c0_201 = arith.constant 0 : index
    %c0_202 = arith.constant 0 : index
    %94 = vector.load %arg2[%c0_198, %c2_199, %c9_200, %c0_201, %c0_202] : memref<1x4x16x4x4xf32, #tpu.memory_space<vmem>>, vector<1x1x1x4x4xf32>
    %95 = vector.shape_cast %94 : vector<1x1x1x4x4xf32> to vector<4x4xf32>
    %c0_203 = arith.constant 0 : index
    %c2_204 = arith.constant 2 : index
    %c10_205 = arith.constant 10 : index
    %c0_206 = arith.constant 0 : index
    %c0_207 = arith.constant 0 : index
    %96 = vector.load %arg2[%c0_203, %c2_204, %c10_205, %c0_206, %c0_207] : memref<1x4x16x4x4xf32, #tpu.memory_space<vmem>>, vector<1x1x1x4x4xf32>
    %97 = vector.shape_cast %96 : vector<1x1x1x4x4xf32> to vector<4x4xf32>
    %c0_208 = arith.constant 0 : index
    %c2_209 = arith.constant 2 : index
    %c11_210 = arith.constant 11 : index
    %c0_211 = arith.constant 0 : index
    %c0_212 = arith.constant 0 : index
    %98 = vector.load %arg2[%c0_208, %c2_209, %c11_210, %c0_211, %c0_212] : memref<1x4x16x4x4xf32, #tpu.memory_space<vmem>>, vector<1x1x1x4x4xf32>
    %99 = vector.shape_cast %98 : vector<1x1x1x4x4xf32> to vector<4x4xf32>
    %c0_213 = arith.constant 0 : index
    %c3_214 = arith.constant 3 : index
    %c8_215 = arith.constant 8 : index
    %c0_216 = arith.constant 0 : index
    %c0_217 = arith.constant 0 : index
    %100 = vector.load %arg2[%c0_213, %c3_214, %c8_215, %c0_216, %c0_217] : memref<1x4x16x4x4xf32, #tpu.memory_space<vmem>>, vector<1x1x1x4x4xf32>
    %101 = vector.shape_cast %100 : vector<1x1x1x4x4xf32> to vector<4x4xf32>
    %c0_218 = arith.constant 0 : index
    %c3_219 = arith.constant 3 : index
    %c9_220 = arith.constant 9 : index
    %c0_221 = arith.constant 0 : index
    %c0_222 = arith.constant 0 : index
    %102 = vector.load %arg2[%c0_218, %c3_219, %c9_220, %c0_221, %c0_222] : memref<1x4x16x4x4xf32, #tpu.memory_space<vmem>>, vector<1x1x1x4x4xf32>
    %103 = vector.shape_cast %102 : vector<1x1x1x4x4xf32> to vector<4x4xf32>
    %c0_223 = arith.constant 0 : index
    %c3_224 = arith.constant 3 : index
    %c10_225 = arith.constant 10 : index
    %c0_226 = arith.constant 0 : index
    %c0_227 = arith.constant 0 : index
    %104 = vector.load %arg2[%c0_223, %c3_224, %c10_225, %c0_226, %c0_227] : memref<1x4x16x4x4xf32, #tpu.memory_space<vmem>>, vector<1x1x1x4x4xf32>
    %105 = vector.shape_cast %104 : vector<1x1x1x4x4xf32> to vector<4x4xf32>
    %c0_228 = arith.constant 0 : index
    %c3_229 = arith.constant 3 : index
    %c11_230 = arith.constant 11 : index
    %c0_231 = arith.constant 0 : index
    %c0_232 = arith.constant 0 : index
    %106 = vector.load %arg2[%c0_228, %c3_229, %c11_230, %c0_231, %c0_232] : memref<1x4x16x4x4xf32, #tpu.memory_space<vmem>>, vector<1x1x1x4x4xf32>
    %107 = vector.shape_cast %106 : vector<1x1x1x4x4xf32> to vector<4x4xf32>
    %108 = tpu.concatenate %77, %79, %81, %83, %85, %87, %89, %91, %93, %95, %97, %99, %101, %103, %105, %107 in 1 : vector<4x4xf32>, vector<4x4xf32>, vector<4x4xf32>, vector<4x4xf32>, vector<4x4xf32>, vector<4x4xf32>, vector<4x4xf32>, vector<4x4xf32>, vector<4x4xf32>, vector<4x4xf32>, vector<4x4xf32>, vector<4x4xf32>, vector<4x4xf32>, vector<4x4xf32>, vector<4x4xf32>, vector<4x4xf32> -> vector<4x64xf32>
    %109 = tpu.concatenate %108, %3 in 1 : vector<4x64xf32>, vector<4x64xf32> -> vector<4x128xf32>
    %110 = arith.truncf %109 : vector<4x128xf32> to vector<4x128xbf16>
    %c8_233 = arith.constant 8 : index
    %c0_234 = arith.constant 0 : index
    %111 = vector.load %arg6[%c8_233, %c0_234] : memref<16x128xbf16, #tpu.memory_space<vmem>>, vector<4x128xbf16>
    tpu.vector_store %arg6[%c8_233, %c0_234], %110 {strides = array<i32>} : memref<16x128xbf16, #tpu.memory_space<vmem>>, vector<4x128xbf16>,
    %c0_235 = arith.constant 0 : index
    %c0_236 = arith.constant 0 : index
    %c12 = arith.constant 12 : index
    %c0_237 = arith.constant 0 : index
    %c0_238 = arith.constant 0 : index
    %112 = vector.load %arg2[%c0_235, %c0_236, %c12, %c0_237, %c0_238] : memref<1x4x16x4x4xf32, #tpu.memory_space<vmem>>, vector<1x1x1x4x4xf32>
    %113 = vector.shape_cast %112 : vector<1x1x1x4x4xf32> to vector<4x4xf32>
    %c0_239 = arith.constant 0 : index
    %c0_240 = arith.constant 0 : index
    %c13 = arith.constant 13 : index
    %c0_241 = arith.constant 0 : index
    %c0_242 = arith.constant 0 : index
    %114 = vector.load %arg2[%c0_239, %c0_240, %c13, %c0_241, %c0_242] : memref<1x4x16x4x4xf32, #tpu.memory_space<vmem>>, vector<1x1x1x4x4xf32>
    %115 = vector.shape_cast %114 : vector<1x1x1x4x4xf32> to vector<4x4xf32>
    %c0_243 = arith.constant 0 : index
    %c0_244 = arith.constant 0 : index
    %c14 = arith.constant 14 : index
    %c0_245 = arith.constant 0 : index
    %c0_246 = arith.constant 0 : index
    %116 = vector.load %arg2[%c0_243, %c0_244, %c14, %c0_245, %c0_246] : memref<1x4x16x4x4xf32, #tpu.memory_space<vmem>>, vector<1x1x1x4x4xf32>
    %117 = vector.shape_cast %116 : vector<1x1x1x4x4xf32> to vector<4x4xf32>
    %c0_247 = arith.constant 0 : index
    %c0_248 = arith.constant 0 : index
    %c15 = arith.constant 15 : index
    %c0_249 = arith.constant 0 : index
    %c0_250 = arith.constant 0 : index
    %118 = vector.load %arg2[%c0_247, %c0_248, %c15, %c0_249, %c0_250] : memref<1x4x16x4x4xf32, #tpu.memory_space<vmem>>, vector<1x1x1x4x4xf32>
    %119 = vector.shape_cast %118 : vector<1x1x1x4x4xf32> to vector<4x4xf32>
    %c0_251 = arith.constant 0 : index
    %c1_252 = arith.constant 1 : index
    %c12_253 = arith.constant 12 : index
    %c0_254 = arith.constant 0 : index
    %c0_255 = arith.constant 0 : index
    %120 = vector.load %arg2[%c0_251, %c1_252, %c12_253, %c0_254, %c0_255] : memref<1x4x16x4x4xf32, #tpu.memory_space<vmem>>, vector<1x1x1x4x4xf32>
    %121 = vector.shape_cast %120 : vector<1x1x1x4x4xf32> to vector<4x4xf32>
    %c0_256 = arith.constant 0 : index
    %c1_257 = arith.constant 1 : index
    %c13_258 = arith.constant 13 : index
    %c0_259 = arith.constant 0 : index
    %c0_260 = arith.constant 0 : index
    %122 = vector.load %arg2[%c0_256, %c1_257, %c13_258, %c0_259, %c0_260] : memref<1x4x16x4x4xf32, #tpu.memory_space<vmem>>, vector<1x1x1x4x4xf32>
    %123 = vector.shape_cast %122 : vector<1x1x1x4x4xf32> to vector<4x4xf32>
    %c0_261 = arith.constant 0 : index
    %c1_262 = arith.constant 1 : index
    %c14_263 = arith.constant 14 : index
    %c0_264 = arith.constant 0 : index
    %c0_265 = arith.constant 0 : index
    %124 = vector.load %arg2[%c0_261, %c1_262, %c14_263, %c0_264, %c0_265] : memref<1x4x16x4x4xf32, #tpu.memory_space<vmem>>, vector<1x1x1x4x4xf32>
    %125 = vector.shape_cast %124 : vector<1x1x1x4x4xf32> to vector<4x4xf32>
    %c0_266 = arith.constant 0 : index
    %c1_267 = arith.constant 1 : index
    %c15_268 = arith.constant 15 : index
    %c0_269 = arith.constant 0 : index
    %c0_270 = arith.constant 0 : index
    %126 = vector.load %arg2[%c0_266, %c1_267, %c15_268, %c0_269, %c0_270] : memref<1x4x16x4x4xf32, #tpu.memory_space<vmem>>, vector<1x1x1x4x4xf32>
    %127 = vector.shape_cast %126 : vector<1x1x1x4x4xf32> to vector<4x4xf32>
    %c0_271 = arith.constant 0 : index
    %c2_272 = arith.constant 2 : index
    %c12_273 = arith.constant 12 : index
    %c0_274 = arith.constant 0 : index
    %c0_275 = arith.constant 0 : index
    %128 = vector.load %arg2[%c0_271, %c2_272, %c12_273, %c0_274, %c0_275] : memref<1x4x16x4x4xf32, #tpu.memory_space<vmem>>, vector<1x1x1x4x4xf32>
    %129 = vector.shape_cast %128 : vector<1x1x1x4x4xf32> to vector<4x4xf32>
    %c0_276 = arith.constant 0 : index
    %c2_277 = arith.constant 2 : index
    %c13_278 = arith.constant 13 : index
    %c0_279 = arith.constant 0 : index
    %c0_280 = arith.constant 0 : index
    %130 = vector.load %arg2[%c0_276, %c2_277, %c13_278, %c0_279, %c0_280] : memref<1x4x16x4x4xf32, #tpu.memory_space<vmem>>, vector<1x1x1x4x4xf32>
    %131 = vector.shape_cast %130 : vector<1x1x1x4x4xf32> to vector<4x4xf32>
    %c0_281 = arith.constant 0 : index
    %c2_282 = arith.constant 2 : index
    %c14_283 = arith.constant 14 : index
    %c0_284 = arith.constant 0 : index
    %c0_285 = arith.constant 0 : index
    %132 = vector.load %arg2[%c0_281, %c2_282, %c14_283, %c0_284, %c0_285] : memref<1x4x16x4x4xf32, #tpu.memory_space<vmem>>, vector<1x1x1x4x4xf32>
    %133 = vector.shape_cast %132 : vector<1x1x1x4x4xf32> to vector<4x4xf32>
    %c0_286 = arith.constant 0 : index
    %c2_287 = arith.constant 2 : index
    %c15_288 = arith.constant 15 : index
    %c0_289 = arith.constant 0 : index
    %c0_290 = arith.constant 0 : index
    %134 = vector.load %arg2[%c0_286, %c2_287, %c15_288, %c0_289, %c0_290] : memref<1x4x16x4x4xf32, #tpu.memory_space<vmem>>, vector<1x1x1x4x4xf32>
    %135 = vector.shape_cast %134 : vector<1x1x1x4x4xf32> to vector<4x4xf32>
    %c0_291 = arith.constant 0 : index
    %c3_292 = arith.constant 3 : index
    %c12_293 = arith.constant 12 : index
    %c0_294 = arith.constant 0 : index
    %c0_295 = arith.constant 0 : index
    %136 = vector.load %arg2[%c0_291, %c3_292, %c12_293, %c0_294, %c0_295] : memref<1x4x16x4x4xf32, #tpu.memory_space<vmem>>, vector<1x1x1x4x4xf32>
    %137 = vector.shape_cast %136 : vector<1x1x1x4x4xf32> to vector<4x4xf32>
    %c0_296 = arith.constant 0 : index
    %c3_297 = arith.constant 3 : index
    %c13_298 = arith.constant 13 : index
    %c0_299 = arith.constant 0 : index
    %c0_300 = arith.constant 0 : index
    %138 = vector.load %arg2[%c0_296, %c3_297, %c13_298, %c0_299, %c0_300] : memref<1x4x16x4x4xf32, #tpu.memory_space<vmem>>, vector<1x1x1x4x4xf32>
    %139 = vector.shape_cast %138 : vector<1x1x1x4x4xf32> to vector<4x4xf32>
    %c0_301 = arith.constant 0 : index
    %c3_302 = arith.constant 3 : index
    %c14_303 = arith.constant 14 : index
    %c0_304 = arith.constant 0 : index
    %c0_305 = arith.constant 0 : index
    %140 = vector.load %arg2[%c0_301, %c3_302, %c14_303, %c0_304, %c0_305] : memref<1x4x16x4x4xf32, #tpu.memory_space<vmem>>, vector<1x1x1x4x4xf32>
    %141 = vector.shape_cast %140 : vector<1x1x1x4x4xf32> to vector<4x4xf32>
    %c0_306 = arith.constant 0 : index
    %c3_307 = arith.constant 3 : index
    %c15_308 = arith.constant 15 : index
    %c0_309 = arith.constant 0 : index
    %c0_310 = arith.constant 0 : index
    %142 = vector.load %arg2[%c0_306, %c3_307, %c15_308, %c0_309, %c0_310] : memref<1x4x16x4x4xf32, #tpu.memory_space<vmem>>, vector<1x1x1x4x4xf32>
    %143 = vector.shape_cast %142 : vector<1x1x1x4x4xf32> to vector<4x4xf32>
    %144 = tpu.concatenate %113, %115, %117, %119, %121, %123, %125, %127, %129, %131, %133, %135, %137, %139, %141, %143 in 1 : vector<4x4xf32>, vector<4x4xf32>, vector<4x4xf32>, vector<4x4xf32>, vector<4x4xf32>, vector<4x4xf32>, vector<4x4xf32>, vector<4x4xf32>, vector<4x4xf32>, vector<4x4xf32>, vector<4x4xf32>, vector<4x4xf32>, vector<4x4xf32>, vector<4x4xf32>, vector<4x4xf32>, vector<4x4xf32> -> vector<4x64xf32>
    %145 = tpu.concatenate %144, %3 in 1 : vector<4x64xf32>, vector<4x64xf32> -> vector<4x128xf32>
    %146 = arith.truncf %145 : vector<4x128xf32> to vector<4x128xbf16>
    %c12_311 = arith.constant 12 : index
    %c0_312 = arith.constant 0 : index
    %147 = vector.load %arg6[%c12_311, %c0_312] : memref<16x128xbf16, #tpu.memory_space<vmem>>, vector<4x128xbf16>
    tpu.vector_store %arg6[%c12_311, %c0_312], %146 {strides = array<i32>} : memref<16x128xbf16, #tpu.memory_space<vmem>>, vector<4x128xbf16>,
    %c0_313 = arith.constant 0 : index
    %c0_314 = arith.constant 0 : index
    %148 = vector.load %arg6[%c0_313, %c0_314] : memref<16x128xbf16, #tpu.memory_space<vmem>>, vector<16x128xbf16>
    %c0_315 = arith.constant 0 : index
    %c0_316 = arith.constant 0 : index
    %149 = vector.load %arg3[%c0_315, %c0_316] : memref<128x128xbf16, #tpu.memory_space<vmem>>, vector<128x128xbf16>
    %cst_317 = arith.constant dense<0.000000e+00> : vector<16x128xf32>
    %150 = tpu.matmul %148, %149, %cst_317 {dimension_numbers = #tpu.dot_dimension_numbers<[1], [0], [0], [1], [0, 0, 1, 1], [], []>} : vector<16x128xbf16>, vector<128x128xbf16>, vector<16x128xf32> -> vector<16x128xf32>
    %c1_318 = arith.constant 1 : index
    %c0_319 = arith.constant 0 : index
    %151 = vector.load %arg4[%c1_318, %c0_319] : memref<17x128xf32, #tpu.memory_space<vmem>>, vector<16x128xf32>
    %152 = arith.addf %150, %151 : vector<16x128xf32>
    %c0_320 = arith.constant 0 : index
    %c1_321 = arith.constant 1 : index
    %c0_322 = arith.constant 0 : index
    %153 = vector.load %arg5[%c0_320, %c1_321, %c0_322] : memref<1x17x128xf32, #tpu.memory_space<vmem>>, vector<1x16x128xf32>
    %154 = vector.shape_cast %153 : vector<1x16x128xf32> to vector<16x128xf32>
    %155 = vector.shape_cast %152 : vector<16x128xf32> to vector<1x16x128xf32>
    tpu.vector_store %arg5[%c0_320, %c1_321, %c0_322], %155 {strides = array<i32>} : memref<1x17x128xf32, #tpu.memory_space<vmem>>, vector<1x16x128xf32>,
    return
  }
  func.func @transform_0(%arg0: i32, %arg1: i32) -> (i32, i32, i32, i32, i32) {
    %c0_i32 = arith.constant 0 : i32
    %c0_i32_0 = arith.constant 0 : i32
    %c0_i32_1 = arith.constant 0 : i32
    %c0_i32_2 = arith.constant 0 : i32
    return %arg0, %c0_i32, %arg1, %c0_i32_0, %c0_i32_1 : i32, i32, i32, i32, i32
  }
  func.func @transform_1(%arg0: i32, %arg1: i32) -> (i32, i32) {
    %c0_i32 = arith.constant 0 : i32
    %c0_i32_0 = arith.constant 0 : i32
    %c0_i32_1 = arith.constant 0 : i32
    return %c0_i32, %c0_i32_0 : i32, i32
  }
  func.func @transform_2(%arg0: i32, %arg1: i32) -> (i32, i32) {
    %c0_i32 = arith.constant 0 : i32
    %c0_i32_0 = arith.constant 0 : i32
    %c0_i32_1 = arith.constant 0 : i32
    return %c0_i32, %c0_i32_0 : i32, i32
  }
  func.func @transform_3(%arg0: i32, %arg1: i32) -> (i32, i32, i32) {
    %c0_i32 = arith.constant 0 : i32
    %c0_i32_0 = arith.constant 0 : i32
    %c0_i32_1 = arith.constant 0 : i32
    return %arg0, %c0_i32, %c0_i32_0 : i32, i32, i32
  }
}

</mosaic_0001>

<llo_original>
// kernel: tpu_custom_call.1
$region0: #{tpu_custom_call.1}
  #allocation0 [shape = 'u32[]', space=smem, size = 0x4, offset = 0x4, fixed_abs, tag = 'smem constant byte address 0x4 - core index']
  #allocation1 [shape = 'u32[144,128]{1,0:T(1,128)}', space=vmem, size = 0x12000, scoped, tag = 'internal scratch']
  #allocation2 [shape = 'bf16[16,128]{1,0:T(16,128)(2,1)}', space=vmem, size = 0x1000, scoped, tag = 'scratch operand']
  %s0 = inlined_call_operand.vmem [shape: f32[2,4,16,4,4], index: 0, kind: input, shape index: {}]
  %s1 = inlined_call_operand.vmem [shape: bf16[128,128], index: 1, kind: input, shape index: {}]
  %s2 = inlined_call_operand.vmem [shape: f32[17,128], index: 2, kind: input, shape index: {}]
  %s3 = inlined_call_operand.vmem [shape: f32[2,17,128], index: 3, kind: output, shape index: {}]
  %s4 = sld [smem:[#allocation0]]
  $region49: #{tpu_custom_call.1} parent=0
    _
  %s6 = ssub.s32 1, %s4
  %s7 = scalar_select 0, %s6, %s4
  loop: start=0, step=1, limit=4
  $region2: #{tpu_custom_call.1} parent=0 // loop_pre_header
    _
  $region3: #{tpu_custom_call.1} parent=0 // loop_header
    %s9 = sphi 0, %s13
    %p10 = scmp.ge.s32.totalorder %s9, 4
    %s16 = sphi 0, %s28
    %s17 = sphi 0, %s24
    %s18 = sphi 0, %s16
    %s19 = sphi 0, %s17
    %s20 = sphi 0, %s18
    %s21 = sphi 0, %s19
    %s33 = sphi 0, %s35
    %s36 = sphi 0, %s33
    %s37 = sphi 0, %s36
    %s53 = sphi 0, %s37
    %s57 = sphi 0, %s57
    %s59 = sphi 0, %s57
    %s60 = sphi 0, %s59
    %s74 = sphi 0, %s60
    %s78 = sphi 0, %s78
    %s80 = sphi 0, %s78
    %s81 = sphi 0, %s80
    %s95 = sphi 0, %s81
    %s101 = sphi 0, %s103
    %s104 = sphi 0, %s101
    %s105 = sphi 0, %s104
    %s121 = sphi 0, %s105
  $region4: #{tpu_custom_call.1} parent=0 // loop_header_branch
    %12 = sbr.rel (%p10) target = $region8
  $region5: #{tpu_custom_call.1} parent=0 // loop_body
    %s14 = ssub.s32 %s9, 1
    %s15 = ssub.s32 %s9, 2
    %s22 = sadd.s32 1, %s17
    %p23 = scmp.ge.s32.totalorder %s22, 1
    %s24 = scalar_select %p23, 0, %s22
    %s25 = sadd.s32 1, %s16
    %s26 = scalar_select %p23, %s25, %s16
    %p27 = scmp.ge.s32.totalorder %s26, 2
    %s28 = scalar_select %p27, 0, %s26
    %s29 = ssub.s32 %s16, %s28
    %s30 = ssub.s32 %s17, %s24
    %s31 = sor.u32 %s29, %s30
    %p32 = scmp.eq.s32.totalorder %s31, 0
    %s34 = sadd.s32 %s33, 1
    %s35 = scalar_select %p32, %s33, %s34
    %p38 = pneg %p32
    %p39 = scmp.eq.s32.totalorder %s9, 1
    %p40 = por %p38, %p39
    %p41 = scmp.ne.s32.totalorder %s33, %s36
    %p42 = scmp.eq.s32.totalorder %s9, 0
    %p43 = por %p41, %p42
    %p44 = scmp.ne.s32.totalorder %s33, %s36
    %p45 = scmp.eq.s32.totalorder %s14, 1
    %p46 = por %p44, %p45
    %p47 = scmp.ne.s32.totalorder %s36, %s37
    %p48 = scmp.eq.s32.totalorder %s14, 0
    %p49 = por %p47, %p48
    %p50 = scmp.ne.s32.totalorder %s36, %s37
    %p51 = scmp.eq.s32.totalorder %s15, 1
    %p52 = por %p50, %p51
    %p54 = scmp.ne.s32.totalorder %s37, %s53
    %p55 = scmp.eq.s32.totalorder %s15, 0
    %p56 = por %p54, %p55
    %s58 = sadd.s32 %s57, 1
    %p61 = scmp.eq.s32.totalorder %s9, 1
    %p62 = scmp.ne.s32.totalorder %s57, %s59
    %p63 = scmp.eq.s32.totalorder %s9, 0
    %p64 = por %p62, %p63
    %p65 = scmp.ne.s32.totalorder %s57, %s59
    %p66 = scmp.eq.s32.totalorder %s14, 1
    %p67 = por %p65, %p66
    %p68 = scmp.ne.s32.totalorder %s59, %s60
    %p69 = scmp.eq.s32.totalorder %s14, 0
    %p70 = por %p68, %p69
    %p71 = scmp.ne.s32.totalorder %s59, %s60
    %p72 = scmp.eq.s32.totalorder %s15, 1
    %p73 = por %p71, %p72
    %p75 = scmp.ne.s32.totalorder %s60, %s74
    %p76 = scmp.eq.s32.totalorder %s15, 0
    %p77 = por %p75, %p76
    %s79 = sadd.s32 %s78, 1
    %p82 = scmp.eq.s32.totalorder %s9, 1
    %p83 = scmp.ne.s32.totalorder %s78, %s80
    %p84 = scmp.eq.s32.totalorder %s9, 0
    %p85 = por %p83, %p84
    %p86 = scmp.ne.s32.totalorder %s78, %s80
    %p87 = scmp.eq.s32.totalorder %s14, 1
    %p88 = por %p86, %p87
    %p89 = scmp.ne.s32.totalorder %s80, %s81
    %p90 = scmp.eq.s32.totalorder %s14, 0
    %p91 = por %p89, %p90
    %p92 = scmp.ne.s32.totalorder %s80, %s81
    %p93 = scmp.eq.s32.totalorder %s15, 1
    %p94 = por %p92, %p93
    %p96 = scmp.ne.s32.totalorder %s81, %s95
    %p97 = scmp.eq.s32.totalorder %s15, 0
    %p98 = por %p96, %p97
    %s99 = ssub.s32 %s16, %s28
    %p100 = scmp.eq.s32.totalorder %s99, 0
    %s102 = sadd.s32 %s101, 1
    %s103 = scalar_select %p100, %s101, %s102
    %p106 = pneg %p100
    %p107 = scmp.eq.s32.totalorder %s9, 1
    %p108 = por %p106, %p107
    %p109 = scmp.ne.s32.totalorder %s101, %s104
    %p110 = scmp.eq.s32.totalorder %s9, 0
    %p111 = por %p109, %p110
    %p112 = scmp.ne.s32.totalorder %s101, %s104
    %p113 = scmp.eq.s32.totalorder %s14, 1
    %p114 = por %p112, %p113
    %p115 = scmp.ne.s32.totalorder %s104, %s105
    %p116 = scmp.eq.s32.totalorder %s14, 0
    %p117 = por %p115, %p116
    %p118 = scmp.ne.s32.totalorder %s104, %s105
    %p119 = scmp.eq.s32.totalorder %s15, 1
    %p120 = por %p118, %p119
    %p122 = scmp.ne.s32.totalorder %s105, %s121
    %p123 = scmp.eq.s32.totalorder %s15, 0
    %p124 = por %p122, %p123
    %p125 = scmp.le.s32.totalorder 1, %s9
    %p126 = scmp.lt.s32.totalorder %s9, 3
    %p127 = pnand %p125, %p126
    %p128 = pneg %p127
    // Predicated region
    $region9: #{tpu_custom_call.1} parent=5 // pred_check
      _
    $region10: #{tpu_custom_call.1} parent=5 // pred_check_branch
      %130 = sbr.rel (%p127) target = $region12
    $region11: #{tpu_custom_call.1} parent=5 // pred_region
      %s131 = ssub.s32 %s9, 1
      // Predicated region
      $region13: #{tpu_custom_call.1} parent=11 // pred_check
        %p132 = pneg %p70
      $region14: #{tpu_custom_call.1} parent=11 // pred_check_branch
        %134 = sbr.rel (%p132) target = $region16
      $region15: #{tpu_custom_call.1} parent=11 // pred_region
        _
      $region16: #{tpu_custom_call.1} parent=11 // pred_fallthru
        _
      // Predicated region
      $region17: #{tpu_custom_call.1} parent=11 // pred_check
        %p135 = pneg %p91
      $region18: #{tpu_custom_call.1} parent=11 // pred_check_branch
        %137 = sbr.rel (%p135) target = $region20
      $region19: #{tpu_custom_call.1} parent=11 // pred_region
        _
      $region20: #{tpu_custom_call.1} parent=11 // pred_fallthru
        _
    $region12: #{tpu_custom_call.1} parent=5 // pred_fallthru
      _
    %p138 = scmp.lt.s32.totalorder %s9, 2
    // Predicated region
    $region21: #{tpu_custom_call.1} parent=5 // pred_check
      %p139 = pneg %p138
    $region22: #{tpu_custom_call.1} parent=5 // pred_check_branch
      %141 = sbr.rel (%p139) target = $region24
    $region23: #{tpu_custom_call.1} parent=5 // pred_region
      // Predicated region
      $region25: #{tpu_custom_call.1} parent=23 // pred_check
        %p142 = pneg %p43
      $region26: #{tpu_custom_call.1} parent=23 // pred_check_branch
        %144 = sbr.rel (%p142) target = $region28
      $region27: #{tpu_custom_call.1} parent=23 // pred_region
        %s145 = smul.u32 16, %s17
        %p146 = scmp.lt.s32.totalorder %s16, 1
        %s147 = scalar_select %p146, %s16, 1
        %p148 = scmp.lt.s32.totalorder %s145, 15
        %s149 = scalar_select %p148, %s145, 15
        %s150 = smul.addr %s147, 64
        %s151 = sadd.s32 %s149, %s150
        %s152 = smul.addr %s151, 4
        %s153 = scalar_lea.vmem %s0, %s152
        %s154 = smul.u32 16, %s17
      $region28: #{tpu_custom_call.1} parent=23 // pred_fallthru
        _
    $region24: #{tpu_custom_call.1} parent=5 // pred_fallthru
      _
    %p155 = scmp.le.s32.totalorder 1, %s9
    %p156 = scmp.lt.s32.totalorder %s9, 3
    %p157 = pnand %p155, %p156
    %p158 = pneg %p157
    // Predicated region
    $region29: #{tpu_custom_call.1} parent=5 // pred_check
      _
    $region30: #{tpu_custom_call.1} parent=5 // pred_check_branch
      %160 = sbr.rel (%p157) target = $region32
    $region31: #{tpu_custom_call.1} parent=5 // pred_region
      %s161 = ssub.s32 %s9, 1
      %s162 = smul.u32 16, %s19
      %p163 = scmp.lt.s32.totalorder %s18, 1
      %s164 = scalar_select %p163, %s18, 1
      %p165 = scmp.lt.s32.totalorder %s162, 15
      %s166 = scalar_select %p165, %s162, 15
      %s167 = smul.addr %s164, 64
      %s168 = sadd.s32 %s166, %s167
      %s169 = smul.addr %s168, 4
      %s170 = scalar_lea.vmem %s0, %s169
      %p171 = pneg %p49
      %p172 = pneg %p46
      %p173 = pneg %p70
      %p174 = pneg %p67
      %p175 = pneg %p91
      %p176 = pneg %p88
      %p177 = pneg %p117
      %p178 = pneg %p114
      %p179 = scmp.lt.s32.totalorder %s18, 1
      %s180 = scalar_select %p179, %s18, 1
      %s181 = smul.addr %s180, 3
      %s182 = smul.addr %s181, 8
      %s183 = scalar_lea.vmem %s3, %s182
      %s184 = smul.u32 16, %s19
      %p185 = scmp.lt.s32.totalorder %s18, 1
      %s186 = scalar_select %p185, %s18, 1
      %p187 = scmp.lt.s32.totalorder %s184, 15
      %s188 = scalar_select %p187, %s184, 15
      %s189 = smul.addr %s186, 64
      %s190 = sadd.s32 %s188, %s189
      %s191 = smul.addr %s190, 4
      %s192 = scalar_lea.vmem %s0, %s191
      %s193 = smul.u32 16, %s19
      %p194 = scmp.lt.s32.totalorder %s18, 1
      %s195 = scalar_select %p194, %s18, 1
      %s196 = smul.addr %s195, 3
      %s197 = smul.addr %s196, 8
      %s198 = scalar_lea.vmem %s3, %s197
      %p200 = scmp.eq.s32.totalorder %s19, 0
      // Predicated region
      $region33: #{tpu_custom_call.1} parent=31 // pred_check
        %p201 = pneg %p200
      $region34: #{tpu_custom_call.1} parent=31 // pred_check_branch
        %203 = sbr.rel (%p201) target = $region36
      $region35: #{tpu_custom_call.1} parent=31 // pred_region
        %v204 = vld [vmem:[%s2] sm:$0x1]
        %205 = vst [vmem:[%s198] sm:$0x1] %v204
      $region36: #{tpu_custom_call.1} parent=31 // pred_fallthru
        _
      %v206 = vld [vmem:[%s192] sm:$0xf]
      %s207 = scalar_lea.vmem %s192, 4
      %v208 = vld [vmem:[%s207] sm:$0xf]
      %s209 = scalar_lea.vmem %s192, 8
      %v210 = vld [vmem:[%s209] sm:$0xf]
      %s211 = scalar_lea.vmem %s192, 12
      %v212 = vld [vmem:[%s211] sm:$0xf]
      %s213 = scalar_lea.vmem %s192, 64
      %v214 = vld [vmem:[%s213] sm:$0xf]
      %s215 = scalar_lea.vmem %s192, 68
      %v216 = vld [vmem:[%s215] sm:$0xf]
      %s217 = scalar_lea.vmem %s192, 72
      %v218 = vld [vmem:[%s217] sm:$0xf]
      %s219 = scalar_lea.vmem %s192, 76
      %v220 = vld [vmem:[%s219] sm:$0xf]
      %s221 = scalar_lea.vmem %s192, 128
      %v222 = vld [vmem:[%s221] sm:$0xf]
      %s223 = scalar_lea.vmem %s192, 132
      %v224 = vld [vmem:[%s223] sm:$0xf]
      %s225 = scalar_lea.vmem %s192, 136
      %v226 = vld [vmem:[%s225] sm:$0xf]
      %s227 = scalar_lea.vmem %s192, 140
      %v228 = vld [vmem:[%s227] sm:$0xf]
      %s229 = scalar_lea.vmem %s192, 192
      %v230 = vld [vmem:[%s229] sm:$0xf]
      %s231 = scalar_lea.vmem %s192, 196
      %v232 = vld [vmem:[%s231] sm:$0xf]
      %s233 = scalar_lea.vmem %s192, 200
      %v234 = vld [vmem:[%s233] sm:$0xf]
      %s235 = scalar_lea.vmem %s192, 204
      %v236 = vld [vmem:[%s235] sm:$0xf]
      %238 = vrot.lane.b32.xlu0 %v208, 4
      %v239 = vpop.permute.xlu0 %238
      %242 = vrot.lane.b32.xlu0 %v210, 8
      %v243 = vpop.permute.xlu0 %242
      %246 = vrot.lane.b32.xlu0 %v212, 12
      %v247 = vpop.permute.xlu0 %246
      %250 = vrot.lane.b32.xlu0 %v214, 16
      %v251 = vpop.permute.xlu0 %250
      %254 = vrot.lane.b32.xlu0 %v216, 20
      %v255 = vpop.permute.xlu0 %254
      %258 = vrot.lane.b32.xlu0 %v218, 24
      %v259 = vpop.permute.xlu0 %258
      %262 = vrot.lane.b32.xlu0 %v220, 28
      %v263 = vpop.permute.xlu0 %262
      %266 = vrot.lane.b32.xlu0 %v222, 32
      %v267 = vpop.permute.xlu0 %266
      %270 = vrot.lane.b32.xlu0 %v224, 36
      %v271 = vpop.permute.xlu0 %270
      %274 = vrot.lane.b32.xlu0 %v226, 40
      %v275 = vpop.permute.xlu0 %274
      %278 = vrot.lane.b32.xlu0 %v228, 44
      %v279 = vpop.permute.xlu0 %278
      %282 = vrot.lane.b32.xlu0 %v230, 48
      %v283 = vpop.permute.xlu0 %282
      %286 = vrot.lane.b32.xlu0 %v232, 52
      %v287 = vpop.permute.xlu0 %286
      %290 = vrot.lane.b32.xlu0 %v234, 56
      %v291 = vpop.permute.xlu0 %290
      %294 = vrot.lane.b32.xlu0 %v236, 60
      %v295 = vpop.permute.xlu0 %294
      %vm297 = vcmask 31744
      %v298 = vsel %vm297, %v206, %v239
      %vm299 = vcmask 64512
      %v300 = vsel %vm299, %v298, %v243
      %vm301 = vcmask 97280
      %v302 = vsel %vm301, %v300, %v247
      %vm303 = vcmask 130048
      %v304 = vsel %vm303, %v302, %v251
      %vm305 = vcmask 162816
      %v306 = vsel %vm305, %v304, %v255
      %vm307 = vcmask 195584
      %v308 = vsel %vm307, %v306, %v259
      %vm309 = vcmask 228352
      %v310 = vsel %vm309, %v308, %v263
      %vm311 = vcmask 261120
      %v312 = vsel %vm311, %v310, %v267
      %vm313 = vcmask 293888
      %v314 = vsel %vm313, %v312, %v271
      %vm315 = vcmask 326656
      %v316 = vsel %vm315, %v314, %v275
      %vm317 = vcmask 359424
      %v318 = vsel %vm317, %v316, %v279
      %vm319 = vcmask 392192
      %v320 = vsel %vm319, %v318, %v283
      %vm321 = vcmask 424960
      %v322 = vsel %vm321, %v320, %v287
      %vm323 = vcmask 457728
      %v324 = vsel %vm323, %v322, %v291
      %vm325 = vcmask 490496
      %v326 = vsel %vm325, %v324, %v295
      %vm327 = vcmask 523264
      %v328 = vsel %vm327, %v326, 0.0
      %v329 = vpack.c.bf16 %v328, %v328
      %330 = vst [vmem:[#allocation2] sm:$0x3] %v329
      %s331 = scalar_lea.vmem %s192, 16
      %v332 = vld [vmem:[%s331] sm:$0xf]
      %s333 = scalar_lea.vmem %s192, 20
      %v334 = vld [vmem:[%s333] sm:$0xf]
      %s335 = scalar_lea.vmem %s192, 24
      %v336 = vld [vmem:[%s335] sm:$0xf]
      %s337 = scalar_lea.vmem %s192, 28
      %v338 = vld [vmem:[%s337] sm:$0xf]
      %s339 = scalar_lea.vmem %s192, 80
      %v340 = vld [vmem:[%s339] sm:$0xf]
      %s341 = scalar_lea.vmem %s192, 84
      %v342 = vld [vmem:[%s341] sm:$0xf]
      %s343 = scalar_lea.vmem %s192, 88
      %v344 = vld [vmem:[%s343] sm:$0xf]
      %s345 = scalar_lea.vmem %s192, 92
      %v346 = vld [vmem:[%s345] sm:$0xf]
      %s347 = scalar_lea.vmem %s192, 144
      %v348 = vld [vmem:[%s347] sm:$0xf]
      %s349 = scalar_lea.vmem %s192, 148
      %v350 = vld [vmem:[%s349] sm:$0xf]
      %s351 = scalar_lea.vmem %s192, 152
      %v352 = vld [vmem:[%s351] sm:$0xf]
      %s353 = scalar_lea.vmem %s192, 156
      %v354 = vld [vmem:[%s353] sm:$0xf]
      %s355 = scalar_lea.vmem %s192, 208
      %v356 = vld [vmem:[%s355] sm:$0xf]
      %s357 = scalar_lea.vmem %s192, 212
      %v358 = vld [vmem:[%s357] sm:$0xf]
      %s359 = scalar_lea.vmem %s192, 216
      %v360 = vld [vmem:[%s359] sm:$0xf]
      %s361 = scalar_lea.vmem %s192, 220
      %v362 = vld [vmem:[%s361] sm:$0xf]
      %364 = vrot.lane.b32.xlu0 %v334, 4
      %v365 = vpop.permute.xlu0 %364
      %368 = vrot.lane.b32.xlu0 %v336, 8
      %v369 = vpop.permute.xlu0 %368
      %372 = vrot.lane.b32.xlu0 %v338, 12
      %v373 = vpop.permute.xlu0 %372
      %376 = vrot.lane.b32.xlu0 %v340, 16
      %v377 = vpop.permute.xlu0 %376
      %380 = vrot.lane.b32.xlu0 %v342, 20
      %v381 = vpop.permute.xlu0 %380
      %384 = vrot.lane.b32.xlu0 %v344, 24
      %v385 = vpop.permute.xlu0 %384
      %388 = vrot.lane.b32.xlu0 %v346, 28
      %v389 = vpop.permute.xlu0 %388
      %392 = vrot.lane.b32.xlu0 %v348, 32
      %v393 = vpop.permute.xlu0 %392
      %396 = vrot.lane.b32.xlu0 %v350, 36
      %v397 = vpop.permute.xlu0 %396
      %400 = vrot.lane.b32.xlu0 %v352, 40
      %v401 = vpop.permute.xlu0 %400
      %404 = vrot.lane.b32.xlu0 %v354, 44
      %v405 = vpop.permute.xlu0 %404
      %408 = vrot.lane.b32.xlu0 %v356, 48
      %v409 = vpop.permute.xlu0 %408
      %412 = vrot.lane.b32.xlu0 %v358, 52
      %v413 = vpop.permute.xlu0 %412
      %416 = vrot.lane.b32.xlu0 %v360, 56
      %v417 = vpop.permute.xlu0 %416
      %420 = vrot.lane.b32.xlu0 %v362, 60
      %v421 = vpop.permute.xlu0 %420
      %v423 = vsel %vm297, %v332, %v365
      %v424 = vsel %vm299, %v423, %v369
      %v425 = vsel %vm301, %v424, %v373
      %v426 = vsel %vm303, %v425, %v377
      %v427 = vsel %vm305, %v426, %v381
      %v428 = vsel %vm307, %v427, %v385
      %v429 = vsel %vm309, %v428, %v389
      %v430 = vsel %vm311, %v429, %v393
      %v431 = vsel %vm313, %v430, %v397
      %v432 = vsel %vm315, %v431, %v401
      %v433 = vsel %vm317, %v432, %v405
      %v434 = vsel %vm319, %v433, %v409
      %v435 = vsel %vm321, %v434, %v413
      %v436 = vsel %vm323, %v435, %v417
      %v437 = vsel %vm325, %v436, %v421
      %v438 = vsel %vm327, %v437, 0.0
      %v439 = vpack.c.bf16 %v438, %v438
      %v441 = vrot.slane %v439, 6
      %443 = vst [vmem:[#allocation2] sm:$0xc] %v441
      %s444 = scalar_lea.vmem %s192, 32
      %v445 = vld [vmem:[%s444] sm:$0xf]
      %s446 = scalar_lea.vmem %s192, 36
      %v447 = vld [vmem:[%s446] sm:$0xf]
      %s448 = scalar_lea.vmem %s192, 40
      %v449 = vld [vmem:[%s448] sm:$0xf]
      %s450 = scalar_lea.vmem %s192, 44
      %v451 = vld [vmem:[%s450] sm:$0xf]
      %s452 = scalar_lea.vmem %s192, 96
      %v453 = vld [vmem:[%s452] sm:$0xf]
      %s454 = scalar_lea.vmem %s192, 100
      %v455 = vld [vmem:[%s454] sm:$0xf]
      %s456 = scalar_lea.vmem %s192, 104
      %v457 = vld [vmem:[%s456] sm:$0xf]
      %s458 = scalar_lea.vmem %s192, 108
      %v459 = vld [vmem:[%s458] sm:$0xf]
      %s460 = scalar_lea.vmem %s192, 160
      %v461 = vld [vmem:[%s460] sm:$0xf]
      %s462 = scalar_lea.vmem %s192, 164
      %v463 = vld [vmem:[%s462] sm:$0xf]
      %s464 = scalar_lea.vmem %s192, 168
      %v465 = vld [vmem:[%s464] sm:$0xf]
      %s466 = scalar_lea.vmem %s192, 172
      %v467 = vld [vmem:[%s466] sm:$0xf]
      %s468 = scalar_lea.vmem %s192, 224
      %v469 = vld [vmem:[%s468] sm:$0xf]
      %s470 = scalar_lea.vmem %s192, 228
      %v471 = vld [vmem:[%s470] sm:$0xf]
      %s472 = scalar_lea.vmem %s192, 232
      %v473 = vld [vmem:[%s472] sm:$0xf]
      %s474 = scalar_lea.vmem %s192, 236
      %v475 = vld [vmem:[%s474] sm:$0xf]
      %477 = vrot.lane.b32.xlu0 %v447, 4
      %v478 = vpop.permute.xlu0 %477
      %481 = vrot.lane.b32.xlu0 %v449, 8
      %v482 = vpop.permute.xlu0 %481
      %485 = vrot.lane.b32.xlu0 %v451, 12
      %v486 = vpop.permute.xlu0 %485
      %489 = vrot.lane.b32.xlu0 %v453, 16
      %v490 = vpop.permute.xlu0 %489
      %493 = vrot.lane.b32.xlu0 %v455, 20
      %v494 = vpop.permute.xlu0 %493
      %497 = vrot.lane.b32.xlu0 %v457, 24
      %v498 = vpop.permute.xlu0 %497
      %501 = vrot.lane.b32.xlu0 %v459, 28
      %v502 = vpop.permute.xlu0 %501
      %505 = vrot.lane.b32.xlu0 %v461, 32
      %v506 = vpop.permute.xlu0 %505
      %509 = vrot.lane.b32.xlu0 %v463, 36
      %v510 = vpop.permute.xlu0 %509
      %513 = vrot.lane.b32.xlu0 %v465, 40
      %v514 = vpop.permute.xlu0 %513
      %517 = vrot.lane.b32.xlu0 %v467, 44
      %v518 = vpop.permute.xlu0 %517
      %521 = vrot.lane.b32.xlu0 %v469, 48
      %v522 = vpop.permute.xlu0 %521
      %525 = vrot.lane.b32.xlu0 %v471, 52
      %v526 = vpop.permute.xlu0 %525
      %529 = vrot.lane.b32.xlu0 %v473, 56
      %v530 = vpop.permute.xlu0 %529
      %533 = vrot.lane.b32.xlu0 %v475, 60
      %v534 = vpop.permute.xlu0 %533
      %v536 = vsel %vm297, %v445, %v478
      %v537 = vsel %vm299, %v536, %v482
      %v538 = vsel %vm301, %v537, %v486
      %v539 = vsel %vm303, %v538, %v490
      %v540 = vsel %vm305, %v539, %v494
      %v541 = vsel %vm307, %v540, %v498
      %v542 = vsel %vm309, %v541, %v502
      %v543 = vsel %vm311, %v542, %v506
      %v544 = vsel %vm313, %v543, %v510
      %v545 = vsel %vm315, %v544, %v514
      %v546 = vsel %vm317, %v545, %v518
      %v547 = vsel %vm319, %v546, %v522
      %v548 = vsel %vm321, %v547, %v526
      %v549 = vsel %vm323, %v548, %v530
      %v550 = vsel %vm325, %v549, %v534
      %v551 = vsel %vm327, %v550, 0.0
      %v552 = vpack.c.bf16 %v551, %v551
      %v554 = vrot.slane %v552, 4
      %556 = vst [vmem:[#allocation2] sm:$0x30] %v554
      %s557 = scalar_lea.vmem %s192, 48
      %v558 = vld [vmem:[%s557] sm:$0xf]
      %s559 = scalar_lea.vmem %s192, 52
      %v560 = vld [vmem:[%s559] sm:$0xf]
      %s561 = scalar_lea.vmem %s192, 56
      %v562 = vld [vmem:[%s561] sm:$0xf]
      %s563 = scalar_lea.vmem %s192, 60
      %v564 = vld [vmem:[%s563] sm:$0xf]
      %s565 = scalar_lea.vmem %s192, 112
      %v566 = vld [vmem:[%s565] sm:$0xf]
      %s567 = scalar_lea.vmem %s192, 116
      %v568 = vld [vmem:[%s567] sm:$0xf]
      %s569 = scalar_lea.vmem %s192, 120
      %v570 = vld [vmem:[%s569] sm:$0xf]
      %s571 = scalar_lea.vmem %s192, 124
      %v572 = vld [vmem:[%s571] sm:$0xf]
      %s573 = scalar_lea.vmem %s192, 176
      %v574 = vld [vmem:[%s573] sm:$0xf]
      %s575 = scalar_lea.vmem %s192, 180
      %v576 = vld [vmem:[%s575] sm:$0xf]
      %s577 = scalar_lea.vmem %s192, 184
      %v578 = vld [vmem:[%s577] sm:$0xf]
      %s579 = scalar_lea.vmem %s192, 188
      %v580 = vld [vmem:[%s579] sm:$0xf]
      %s581 = scalar_lea.vmem %s192, 240
      %v582 = vld [vmem:[%s581] sm:$0xf]
      %s583 = scalar_lea.vmem %s192, 244
      %v584 = vld [vmem:[%s583] sm:$0xf]
      %s585 = scalar_lea.vmem %s192, 248
      %v586 = vld [vmem:[%s585] sm:$0xf]
      %s587 = scalar_lea.vmem %s192, 252
      %v588 = vld [vmem:[%s587] sm:$0xf]
      %590 = vrot.lane.b32.xlu0 %v560, 4
      %v591 = vpop.permute.xlu0 %590
      %594 = vrot.lane.b32.xlu0 %v562, 8
      %v595 = vpop.permute.xlu0 %594
      %598 = vrot.lane.b32.xlu0 %v564, 12
      %v599 = vpop.permute.xlu0 %598
      %602 = vrot.lane.b32.xlu0 %v566, 16
      %v603 = vpop.permute.xlu0 %602
      %606 = vrot.lane.b32.xlu0 %v568, 20
      %v607 = vpop.permute.xlu0 %606
      %610 = vrot.lane.b32.xlu0 %v570, 24
      %v611 = vpop.permute.xlu0 %610
      %614 = vrot.lane.b32.xlu0 %v572, 28
      %v615 = vpop.permute.xlu0 %614
      %618 = vrot.lane.b32.xlu0 %v574, 32
      %v619 = vpop.permute.xlu0 %618
      %622 = vrot.lane.b32.xlu0 %v576, 36
      %v623 = vpop.permute.xlu0 %622
      %626 = vrot.lane.b32.xlu0 %v578, 40
      %v627 = vpop.permute.xlu0 %626
      %630 = vrot.lane.b32.xlu0 %v580, 44
      %v631 = vpop.permute.xlu0 %630
      %634 = vrot.lane.b32.xlu0 %v582, 48
      %v635 = vpop.permute.xlu0 %634
      %638 = vrot.lane.b32.xlu0 %v584, 52
      %v639 = vpop.permute.xlu0 %638
      %642 = vrot.lane.b32.xlu0 %v586, 56
      %v643 = vpop.permute.xlu0 %642
      %646 = vrot.lane.b32.xlu0 %v588, 60
      %v647 = vpop.permute.xlu0 %646
      %v649 = vsel %vm297, %v558, %v591
      %v650 = vsel %vm299, %v649, %v595
      %v651 = vsel %vm301, %v650, %v599
      %v652 = vsel %vm303, %v651, %v603
      %v653 = vsel %vm305, %v652, %v607
      %v654 = vsel %vm307, %v653, %v611
      %v655 = vsel %vm309, %v654, %v615
      %v656 = vsel %vm311, %v655, %v619
      %v657 = vsel %vm313, %v656, %v623
      %v658 = vsel %vm315, %v657, %v627
      %v659 = vsel %vm317, %v658, %v631
      %v660 = vsel %vm319, %v659, %v635
      %v661 = vsel %vm321, %v660, %v639
      %v662 = vsel %vm323, %v661, %v643
      %v663 = vsel %vm325, %v662, %v647
      %v664 = vsel %vm327, %v663, 0.0
      %v665 = vpack.c.bf16 %v664, %v664
      %v667 = vrot.slane %v665, 2
      %669 = vst [vmem:[#allocation2] sm:$0xc0] %v667
      %v670 = vld [vmem:[#allocation2] sm:$0xff]
      %v671 = vld [vmem:[%s1] sm:$0xf]
      %v672 = vld [vmem:[%s1 + $0x4] sm:$0xf]
      %v673 = vld [vmem:[%s1 + $0x8] sm:$0xf]
      %v674 = vld [vmem:[%s1 + $0xc] sm:$0xf]
      %v675 = vld [vmem:[%s1 + $0x10] sm:$0xf]
      %v676 = vld [vmem:[%s1 + $0x14] sm:$0xf]
      %v677 = vld [vmem:[%s1 + $0x18] sm:$0xf]
      %v678 = vld [vmem:[%s1 + $0x1c] sm:$0xf]
      %v679 = vld [vmem:[%s1 + $0x20] sm:$0xf]
      %v680 = vld [vmem:[%s1 + $0x24] sm:$0xf]
      %v681 = vld [vmem:[%s1 + $0x28] sm:$0xf]
      %v682 = vld [vmem:[%s1 + $0x2c] sm:$0xf]
      %v683 = vld [vmem:[%s1 + $0x30] sm:$0xf]
      %v684 = vld [vmem:[%s1 + $0x34] sm:$0xf]
      %v685 = vld [vmem:[%s1 + $0x38] sm:$0xf]
      %v686 = vld [vmem:[%s1 + $0x3c] sm:$0xf]
      %v687 = vld [vmem:[%s2 + $0x1] sm:$0xff]
      %v688 = vld [vmem:[%s2 + $0x9] sm:$0xff]
      %v705 = vunpack.c.l.b16 %v671
      %v706 = vunpack.c.l.b16 %v672
      %v707 = vunpack.c.l.b16 %v673
      %v708 = vunpack.c.l.b16 %v674
      %v709 = vunpack.c.l.b16 %v675
      %v710 = vunpack.c.l.b16 %v676
      %v711 = vunpack.c.l.b16 %v677
      %v712 = vunpack.c.l.b16 %v678
      %v713 = vunpack.c.l.b16 %v679
      %v714 = vunpack.c.l.b16 %v680
      %v715 = vunpack.c.l.b16 %v681
      %v716 = vunpack.c.l.b16 %v682
      %v717 = vunpack.c.l.b16 %v683
      %v718 = vunpack.c.l.b16 %v684
      %v719 = vunpack.c.l.b16 %v685
      %v720 = vunpack.c.l.b16 %v686
      %v721 = vpack.c.b16 %v706, %v705
      %v722 = vpack.c.b16 %v708, %v707
      %v723 = vpack.c.b16 %v710, %v709
      %v724 = vpack.c.b16 %v712, %v711
      %v725 = vpack.c.b16 %v714, %v713
      %v726 = vpack.c.b16 %v716, %v715
      %v727 = vpack.c.b16 %v718, %v717
      %v728 = vpack.c.b16 %v720, %v719
      %737 = vmatprep.subr.bf16.mxu0 0
      %738 = vmatpush1.bf16.msra.mxu0 %v721
      %739 = vmatprep.subr.bf16.mxu0 0
      %740 = vmatpush1.bf16.msra.mxu0 %v722
      %741 = vmatprep.subr.bf16.mxu0 0
      %742 = vmatpush1.bf16.msra.mxu0 %v723
      %743 = vmatprep.subr.bf16.mxu0 0
      %744 = vmatpush1.bf16.msra.mxu0 %v724
      %745 = vmatprep.subr.bf16.mxu0 0
      %746 = vmatpush1.bf16.msra.mxu0 %v725
      %747 = vmatprep.subr.bf16.mxu0 0
      %748 = vmatpush1.bf16.msra.mxu0 %v726
      %749 = vmatprep.subr.bf16.mxu0 0
      %750 = vmatpush1.bf16.msra.mxu0 %v727
      %751 = vmatprep.subr.bf16.mxu0 0
      %752 = vmatpush1.bf16.msra.mxu0 %v728
      %753 = vmatprep.subr.bf16.mxu0 0
      %754 = vmatpush1.bf16.msra.mxu0 0
      %755 = vmatprep.subr.bf16.mxu0 0
      %756 = vmatpush1.bf16.msra.mxu0 0
      %757 = vmatprep.subr.bf16.mxu0 0
      %758 = vmatpush1.bf16.msra.mxu0 0
      %759 = vmatprep.subr.bf16.mxu0 0
      %760 = vmatpush1.bf16.msra.mxu0 0
      %761 = vmatprep.subr.bf16.mxu0 0
      %762 = vmatpush1.bf16.msra.mxu0 0
      %763 = vmatprep.subr.bf16.mxu0 0
      %764 = vmatpush1.bf16.msra.mxu0 0
      %765 = vmatprep.subr.bf16.mxu0 0
      %766 = vmatpush1.bf16.msra.mxu0 0
      %767 = vmatprep.subr.bf16.mxu0 0
      %768 = vmatpush1.bf16.msra.mxu0 0
      %769 = vmatprep.mubr.bf16.mxu0 0
      %770 = vmatmul.mubr.bf16.gmra.mrb[0].mxu0 %v670
      %v771 = vpop.f32.mrb[0].mxu0
      %v772 = vadd.f32 %v687, %v771
      %v773 = vpop.f32.mrb[0].mxu0
      %v774 = vpop.f32.mrb[0].mxu0
      %v775 = vadd.f32 %v688, %v774
      %v776 = vpop.f32.mrb[0].mxu0
      %777 = vdwg.mxu0
      %778 = vst [vmem:[%s198 + $0x1] sm:$0xff] %v772
      %779 = vst [vmem:[%s198 + $0x9] sm:$0xff] %v775
      %p780 = scmp.lt.s32.totalorder %s18, 1
      %s781 = scalar_select %p780, %s18, 1
      %s782 = smul.addr %s781, 3
      %s783 = smul.addr %s782, 8
      %s784 = scalar_lea.vmem %s3, %s783
      // Predicated region
      $region37: #{tpu_custom_call.1} parent=31 // pred_check
        %p785 = pneg %p114
      $region38: #{tpu_custom_call.1} parent=31 // pred_check_branch
        %787 = sbr.rel (%p785) target = $region40
      $region39: #{tpu_custom_call.1} parent=31 // pred_region
        _
      $region40: #{tpu_custom_call.1} parent=31 // pred_fallthru
        _
    $region32: #{tpu_custom_call.1} parent=5 // pred_fallthru
      _
    %p788 = scmp.le.s32.totalorder 2, %s9
    // Predicated region
    $region41: #{tpu_custom_call.1} parent=5 // pred_check
      %p789 = pneg %p788
    $region42: #{tpu_custom_call.1} parent=5 // pred_check_branch
      %791 = sbr.rel (%p789) target = $region44
    $region43: #{tpu_custom_call.1} parent=5 // pred_region
      %s792 = ssub.s32 %s9, 2
      // Predicated region
      $region45: #{tpu_custom_call.1} parent=43 // pred_check
        %p793 = pneg %p120
      $region46: #{tpu_custom_call.1} parent=43 // pred_check_branch
        %795 = sbr.rel (%p793) target = $region48
      $region47: #{tpu_custom_call.1} parent=43 // pred_region
        %p796 = scmp.lt.s32.totalorder %s20, 1
        %s797 = scalar_select %p796, %s20, 1
        %s798 = smul.addr %s797, 3
        %s799 = smul.addr %s798, 8
        %s800 = scalar_lea.vmem %s3, %s799
      $region48: #{tpu_custom_call.1} parent=43 // pred_fallthru
        _
    $region44: #{tpu_custom_call.1} parent=5 // pred_fallthru
      _
  $region6: #{tpu_custom_call.1} parent=0 // loop_footer
    %s13 = sadd.s32 1, %s9
  $region7: #{tpu_custom_call.1} parent=0 // loop_footer_branch
    %8 = sbr.rel target = $region3
  $region8: #{tpu_custom_call.1} parent=0 // loop_exit
    _

</llo_original>
